<compile_context>
chip_gen: v7x
topology: tpu7x:2x2x1
jax: 0.10.0
libtpu: 0.0.40
codegen_flags: <defaults>
</compile_context>

<pallas_src>
import jax
import jax.numpy as jnp
from jax.experimental import pallas as pl
from jax.experimental.pallas import tpu as pltpu

# BERT special-token ids (bert-base-uncased conventions)
CLS_ID = 101
SEP_ID = 102
PAD_ID = 0


def _tokenize_kernel(tok_ref, len_ref, ids_ref, mask_ref):
    TB, L = ids_ref.shape  # static block shape

    toks = tok_ref[...]                       # [TB, L] raw token ids (pos i -> token i)
    lens = len_ref[...]                       # [TB, 1] true sequence lengths

    # truncation=True, max_length=L  =>  keep at most L-2 content tokens
    # (clip at 0 guards against negative lengths)
    n = jnp.clip(lens, 0, L - 2)              # [TB, 1] effective content length
    sep_pos = n + 1                           # [TB, 1] SEP position (hoisted, reused twice)

    pos = jax.lax.broadcasted_iota(jnp.int32, (TB, L), 1)   # [TB, L] position index

    # Shift tokens right by one lane so position p holds token p-1 (room for CLS).
    # NOTE: the last token wraps to position 0 and is overwritten by CLS below --
    # the CLS jnp.where MUST stay last.
    shifted = pltpu.roll(toks, shift=1, axis=1)

    keep = pos <= sep_pos                                     # CLS..SEP region
    ids = jnp.where(keep, shifted, jnp.int32(PAD_ID))         # PAD beyond SEP
    ids = jnp.where(pos == sep_pos, jnp.int32(SEP_ID), ids)   # SEP right after content
    ids = jnp.where(pos == 0, jnp.int32(CLS_ID), ids)         # CLS at position 0 (last!)

    ids_ref[...] = ids
    mask_ref[...] = keep.astype(mask_ref.dtype)               # int8: 1 on CLS..SEP, 0 on PAD
    # token_type_ids (all zeros) intentionally NOT written here -- produced in
    # the wrapper as a broadcast constant to avoid a full HBM writeback plane.


def _pick_tile_b(B, L, vmem_budget_bytes=16 * 1024 * 1024):
    """Batch-tile rows per grid step.

    Per-row VMEM bytes (each buffer double-buffered by the pipeline):
      toks int32 (L*4) + lane-padded lengths block ((tb,1)->(tb,128) int32 = 512)
      + ids int32 (L*4) + mask int8 (L*1)
    Rows rounded to a multiple of 32 (int8 sublane tile) and capped at
    ~cdiv(B, 4) so the grid has >= 4 steps (pipelining + v7x dual-TC sharding).
    """
    per_row_bytes = 2 * (L * 4 + 128 * 4 + L * 4 + L * 1)
    tb = vmem_budget_bytes // per_row_bytes
    tb = min(tb, max(32, pl.cdiv(B, 4)))
    tb = max(32, (tb // 32) * 32)
    return tb


def _tokenize_pallas(token_ids, lengths, max_len, *, tile_b=None):
    B = token_ids.shape[0]
    L = max_len
    assert token_ids.shape == (B, L)
    # Best store performance when L is a multiple of 128 (lane-dense stores);
    # other L still works (block spans the full last dim).

    tb = _pick_tile_b(B, L) if tile_b is None else tile_b
    assert tb % 32 == 0, "tile_b must be a multiple of 32 (int8 sublane tile)"

    num_tiles = pl.cdiv(B, tb)

    toks = token_ids.astype(jnp.int32)
    lens2d = lengths.reshape(B, 1).astype(jnp.int32)

    # No batch padding / post-slicing: outputs are exactly (B, L) and Pallas
    # handles the partial boundary block (reads beyond B are garbage rows that
    # never influence valid rows -- computation is row-independent -- and OOB
    # writes are dropped).
    out_shapes = (
        jax.ShapeDtypeStruct((B, L), jnp.int32),   # input_ids
        jax.ShapeDtypeStruct((B, L), jnp.int8),    # attention_mask
    )
    ids, mask = pl.pallas_call(
        _tokenize_kernel,
        out_shape=out_shapes,
        grid=(num_tiles,),
        in_specs=[
            pl.BlockSpec((tb, L), lambda i: (i, 0)),
            pl.BlockSpec((tb, 1), lambda i: (i, 0)),
        ],
        out_specs=(
            pl.BlockSpec((tb, L), lambda i: (i, 0)),
            pl.BlockSpec((tb, L), lambda i: (i, 0)),
        ),
        compiler_params=pltpu.CompilerParams(
            dimension_semantics=("parallel",),
            # ~16 MiB of live double-buffered tiles + headroom; above v5e's
            # 16 MiB scoped default, within v7x's 32 MiB scoped / 64 MiB phys.
            vmem_limit_bytes=32 * 1024 * 1024,
        ),
    )(toks, lens2d)

    return ids, mask


def _tokenize_jax(token_ids, lengths, max_len):
    """Plain-JAX path mirroring BertTokenizer post-string-mapping behavior.
    Used both as the small-batch fast path and as the correctness reference."""
    B, L = token_ids.shape
    n = jnp.clip(lengths.reshape(B, 1).astype(jnp.int32), 0, L - 2)
    sep_pos = n + 1
    pos = jnp.broadcast_to(jnp.arange(L, dtype=jnp.int32)[None, :], (B, L))
    shifted = jnp.concatenate(
        [jnp.zeros((B, 1), jnp.int32), token_ids.astype(jnp.int32)[:, :-1]], axis=1)
    keep = pos <= sep_pos
    ids = jnp.where(keep, shifted, PAD_ID)
    ids = jnp.where(pos == sep_pos, SEP_ID, ids)
    ids = jnp.where(pos == 0, CLS_ID, ids)
    return ids.astype(jnp.int32), keep.astype(jnp.int8)


def tokenize(token_ids, lengths, max_len, *, tile_b=None, min_pallas_batch=64):
    """token_ids: [B, max_len] int (first `lengths[b]` entries valid per row)
       lengths:   [B] int
       returns dict(input_ids int32, attention_mask int8, token_type_ids int8),
       each [B, max_len]."""
    B = token_ids.shape[0]
    if B < max(min_pallas_batch, 32):
        # Kernel-launch overhead dominates for tiny batches; XLA's fused
        # elementwise path is already at roofline there. Also guarantees the
        # Pallas path always has B >= one 32-row int8 tile.
        ids, mask = _tokenize_jax(token_ids, lengths, max_len)
    else:
        ids, mask = _tokenize_pallas(token_ids, lengths, max_len, tile_b=tile_b)
    return {
        "input_ids": ids,
        "attention_mask": mask,
        # Single-sentence input -> all zeros; kept as a cheap int8 broadcast
        # constant (never written back from the kernel).
        "token_type_ids": jnp.zeros((B, max_len), jnp.int8),
    }


if __name__ == "__main__":
    MAX_LEN = 128   # lane-aligned max_len
    key = jax.random.PRNGKey(0)

    # Cases:
    #   (64, None) -> tile picker, tile divides batch exactly (2 grid steps)
    #   (40, 32)   -> explicit 32-row tile, non-divisible batch -> partial
    #                 boundary block (no pad / no post-slice copies)
    for batch, tile_b in [(64, None), (40, 32)]:
        key, k1, k2 = jax.random.split(key, 3)
        # synthetic pre-tokenized wordpiece ids in a BERT-ish vocab range
        token_ids = jax.random.randint(k1, (batch, MAX_LEN), 1000, 30000, dtype=jnp.int32)
        # per-row true lengths: includes 0 and values > MAX_LEN-2 (truncation)
        lengths = jax.random.randint(k2, (batch,), 0, MAX_LEN + 8, dtype=jnp.int32)
        lengths = lengths.at[0].set(0)
        lengths = lengths.at[1].set(MAX_LEN - 2 + 10)

        out = tokenize(token_ids, lengths, MAX_LEN, tile_b=tile_b, min_pallas_batch=1)
        jax.block_until_ready(out)

        ref_ids, ref_mask = _tokenize_jax(token_ids, lengths, MAX_LEN)
        assert out["input_ids"].dtype == jnp.int32
        assert out["attention_mask"].dtype == jnp.int8
        assert jnp.array_equal(out["input_ids"], ref_ids), "input_ids mismatch"
        assert jnp.array_equal(out["attention_mask"], ref_mask), "attention_mask mismatch"
        assert jnp.array_equal(
            out["token_type_ids"], jnp.zeros((batch, MAX_LEN), jnp.int8)
        ), "token_type_ids mismatch"

    print("KERNEL_OK")
</pallas_src>

<mosaic_0001>
module attributes {stable_mosaic.version = 11 : i64} {
  func.func @_tokenize_kernel(%arg0: i32, %arg1: memref<32x128xi32, #tpu.memory_space<vmem>>, %arg2: memref<32x1xi32, #tpu.memory_space<vmem>>, %arg3: memref<32x128xi32, #tpu.memory_space<vmem>>, %arg4: memref<32x128xi8, #tpu.memory_space<vmem>>) attributes {dimension_semantics = [#tpu.dimension_semantics<parallel>], iteration_bounds = array<i64: 2>, scalar_prefetch = 0 : i64, scratch_operands = 0 : i64, tpu.core_type = #tpu.core_type<tc>, window_params = [{transform_indices = @transform_0, window_bounds = array<i64: 32, 128>}, {transform_indices = @transform_1, window_bounds = array<i64: 32, 1>}, {transform_indices = @transform_2, window_bounds = array<i64: 32, 128>}, {transform_indices = @transform_3, window_bounds = array<i64: 32, 128>}]} {
    %c0 = arith.constant 0 : index
    %c0_0 = arith.constant 0 : index
    %0 = vector.load %arg1[%c0, %c0_0] : memref<32x128xi32, #tpu.memory_space<vmem>>, vector<32x128xi32>
    %c0_1 = arith.constant 0 : index
    %c0_2 = arith.constant 0 : index
    %1 = vector.load %arg2[%c0_1, %c0_2] : memref<32x1xi32, #tpu.memory_space<vmem>>, vector<32x1xi32>
    %c0_i32 = arith.constant 0 : i32
    %c126_i32 = arith.constant 126 : i32
    %2 = vector.broadcast %c0_i32 : i32 to vector<32x1xi32>
    %3 = arith.maxsi %2, %1 : vector<32x1xi32>
    %4 = vector.broadcast %c126_i32 : i32 to vector<32x1xi32>
    %5 = arith.minsi %4, %3 : vector<32x1xi32>
    %c1_i32 = arith.constant 1 : i32
    %6 = vector.broadcast %c1_i32 : i32 to vector<32x1xi32>
    %7 = arith.addi %5, %6 : vector<32x1xi32>
    %8 = tpu.iota {dimensions = array<i32: 1>} : vector<32x128xi32>
    %c1_i32_3 = arith.constant 1 : i32
    %9 = tpu.dynamic_rotate %0 by %c1_i32_3 dim 1 : vector<32x128xi32>, i32 -> vector<32x128xi32>
    %10 = vector.broadcast %7 : vector<32x1xi32> to vector<32x128xi32>
    %11 = arith.cmpi sle, %8, %10 : vector<32x128xi32>
    %c0_i32_4 = arith.constant 0 : i32
    %12 = vector.broadcast %c0_i32_4 : i32 to vector<32x128xi32>
    %13 = arith.select %11, %9, %12 : vector<32x128xi1>, vector<32x128xi32>
    %14 = vector.broadcast %7 : vector<32x1xi32> to vector<32x128xi32>
    %15 = arith.cmpi eq, %8, %14 : vector<32x128xi32>
    %c102_i32 = arith.constant 102 : i32
    %16 = vector.broadcast %c102_i32 : i32 to vector<32x128xi32>
    %17 = arith.select %15, %16, %13 : vector<32x128xi1>, vector<32x128xi32>
    %c0_i32_5 = arith.constant 0 : i32
    %18 = vector.broadcast %c0_i32_5 : i32 to vector<32x128xi32>
    %19 = arith.cmpi eq, %8, %18 : vector<32x128xi32>
    %c101_i32 = arith.constant 101 : i32
    %20 = vector.broadcast %c101_i32 : i32 to vector<32x128xi32>
    %21 = arith.select %19, %20, %17 : vector<32x128xi1>, vector<32x128xi32>
    %c0_6 = arith.constant 0 : index
    %c0_7 = arith.constant 0 : index
    %22 = vector.load %arg3[%c0_6, %c0_7] : memref<32x128xi32, #tpu.memory_space<vmem>>, vector<32x128xi32>
    tpu.vector_store %arg3[%c0_6, %c0_7], %21 {strides = array<i32>} : memref<32x128xi32, #tpu.memory_space<vmem>>, vector<32x128xi32>,
    %23 = arith.extui %11 : vector<32x128xi1> to vector<32x128xi8>
    %c0_8 = arith.constant 0 : index
    %c0_9 = arith.constant 0 : index
    %24 = vector.load %arg4[%c0_8, %c0_9] : memref<32x128xi8, #tpu.memory_space<vmem>>, vector<32x128xi8>
    tpu.vector_store %arg4[%c0_8, %c0_9], %23 {strides = array<i32>} : memref<32x128xi8, #tpu.memory_space<vmem>>, vector<32x128xi8>,
    return
  }
  func.func @transform_0(%arg0: i32) -> (i32, i32) {
    %c0_i32 = arith.constant 0 : i32
    %c0_i32_0 = arith.constant 0 : i32
    return %arg0, %c0_i32 : i32, i32
  }
  func.func @transform_1(%arg0: i32) -> (i32, i32) {
    %c0_i32 = arith.constant 0 : i32
    %c0_i32_0 = arith.constant 0 : i32
    return %arg0, %c0_i32 : i32, i32
  }
  func.func @transform_2(%arg0: i32) -> (i32, i32) {
    %c0_i32 = arith.constant 0 : i32
    %c0_i32_0 = arith.constant 0 : i32
    return %arg0, %c0_i32 : i32, i32
  }
  func.func @transform_3(%arg0: i32) -> (i32, i32) {
    %c0_i32 = arith.constant 0 : i32
    %c0_i32_0 = arith.constant 0 : i32
    return %arg0, %c0_i32 : i32, i32
  }
}

</mosaic_0001>

<llo_original>
// kernel: tpu_custom_call.1
$region0: #{tpu_custom_call.1}
  #allocation0 [shape = 'u32[]', space=smem, size = 0x4, offset = 0x4, fixed_abs, tag = 'smem constant byte address 0x4 - core index']
  #allocation1 [shape = 'u32[144,128]{1,0:T(1,128)}', space=vmem, size = 0x12000, scoped, tag = 'internal scratch']
  %s0 = inlined_call_operand.vmem [shape: s32[64,128], index: 0, kind: input, shape index: {}]
  %s1 = inlined_call_operand.vmem [shape: s32[64,1], index: 1, kind: input, shape index: {}]
  %s2 = inlined_call_operand.hbm [shape: s32[64,128], index: 2, kind: output, shape index: {0}]
  %s3 = inlined_call_operand.hbm [shape: s8[64,128], index: 3, kind: output, shape index: {1}]
  %4 = xla_tuple %s2, %s3
  %s5 = sld [smem:[#allocation0]]
  $region49: #{tpu_custom_call.1} parent=0
    _
  %s7 = ssub.s32 1, %s5
  %s8 = scalar_select 0, %s7, %s5
  $region1: #{tpu_custom_call.1} parent=0
    #allocation2 [shape = 'u8[32768]{0}', space=vmem, size = 0x8000, scoped, tag = 'output window, operand 0']
    #allocation3 [shape = 's32[2]{0}', space=sflag, size = 0x8, scoped, tag = 'scoped memory for tpu_custom_call.1']
    #allocation4 [shape = 'u8[8192]{0}', space=vmem, size = 0x2000, scoped, tag = 'output window, operand 1']
    #allocation5 [shape = 's32[2]{0}', space=sflag, size = 0x8, scoped, tag = 'scoped memory for tpu_custom_call.1']
    %9 = vsyncpa [#allocation3], 0
    %s10 = scalar_lea.sflag [#allocation3], 1
    %11 = vsyncpa %s10, 0
    %12 = vsyncpa [#allocation5], 0
    %s13 = scalar_lea.sflag [#allocation5], 1
    %14 = vsyncpa %s13, 0
    loop: start=0, step=1, limit=4
    $region2: #{tpu_custom_call.1} parent=1 // loop_pre_header
      _
    $region3: #{tpu_custom_call.1} parent=1 // loop_header
      %s16 = sphi 0, %s20
      %p17 = scmp.ge.s32.totalorder %s16, 4
      %s26 = sphi 0, %s28
      %s29 = sphi 0, %s26
      %s30 = sphi 0, %s29
      %s46 = sphi 0, %s30
      %s52 = sphi 0, %s54
      %s55 = sphi 0, %s52
      %s56 = sphi 0, %s55
      %s72 = sphi 0, %s56
      %s78 = sphi 0, %s80
      %s81 = sphi 0, %s78
      %s82 = sphi 0, %s81
      %s98 = sphi 0, %s82
      %s104 = sphi 0, %s106
      %s107 = sphi 0, %s104
      %s108 = sphi 0, %s107
      %s124 = sphi 0, %s108
    $region4: #{tpu_custom_call.1} parent=1 // loop_header_branch
      %19 = sbr.rel (%p17) target = $region8
    $region5: #{tpu_custom_call.1} parent=1 // loop_body
      %s21 = ssub.s32 %s16, 1
      %s22 = ssub.s32 %s16, 2
      %s23 = sadd.s32 %s16, 1
      %s24 = ssub.s32 %s16, %s23
      %p25 = scmp.eq.s32.totalorder %s24, 0
      %s27 = sadd.s32 %s26, 1
      %s28 = scalar_select %p25, %s26, %s27
      %p31 = pneg %p25
      %p32 = scmp.eq.s32.totalorder %s16, 1
      %p33 = por %p31, %p32
      %p34 = scmp.ne.s32.totalorder %s26, %s29
      %p35 = scmp.eq.s32.totalorder %s16, 0
      %p36 = por %p34, %p35
      %p37 = scmp.ne.s32.totalorder %s26, %s29
      %p38 = scmp.eq.s32.totalorder %s21, 1
      %p39 = por %p37, %p38
      %p40 = scmp.ne.s32.totalorder %s29, %s30
      %p41 = scmp.eq.s32.totalorder %s21, 0
      %p42 = por %p40, %p41
      %p43 = scmp.ne.s32.totalorder %s29, %s30
      %p44 = scmp.eq.s32.totalorder %s22, 1
      %p45 = por %p43, %p44
      %p47 = scmp.ne.s32.totalorder %s30, %s46
      %p48 = scmp.eq.s32.totalorder %s22, 0
      %p49 = por %p47, %p48
      %s50 = ssub.s32 %s16, %s23
      %p51 = scmp.eq.s32.totalorder %s50, 0
      %s53 = sadd.s32 %s52, 1
      %s54 = scalar_select %p51, %s52, %s53
      %p57 = pneg %p51
      %p58 = scmp.eq.s32.totalorder %s16, 1
      %p59 = por %p57, %p58
      %p60 = scmp.ne.s32.totalorder %s52, %s55
      %p61 = scmp.eq.s32.totalorder %s16, 0
      %p62 = por %p60, %p61
      %p63 = scmp.ne.s32.totalorder %s52, %s55
      %p64 = scmp.eq.s32.totalorder %s21, 1
      %p65 = por %p63, %p64
      %p66 = scmp.ne.s32.totalorder %s55, %s56
      %p67 = scmp.eq.s32.totalorder %s21, 0
      %p68 = por %p66, %p67
      %p69 = scmp.ne.s32.totalorder %s55, %s56
      %p70 = scmp.eq.s32.totalorder %s22, 1
      %p71 = por %p69, %p70
      %p73 = scmp.ne.s32.totalorder %s56, %s72
      %p74 = scmp.eq.s32.totalorder %s22, 0
      %p75 = por %p73, %p74
      %s76 = ssub.s32 %s16, %s23
      %p77 = scmp.eq.s32.totalorder %s76, 0
      %s79 = sadd.s32 %s78, 1
      %s80 = scalar_select %p77, %s78, %s79
      %p83 = pneg %p77
      %p84 = scmp.eq.s32.totalorder %s16, 1
      %p85 = por %p83, %p84
      %p86 = scmp.ne.s32.totalorder %s78, %s81
      %p87 = scmp.eq.s32.totalorder %s16, 0
      %p88 = por %p86, %p87
      %p89 = scmp.ne.s32.totalorder %s78, %s81
      %p90 = scmp.eq.s32.totalorder %s21, 1
      %p91 = por %p89, %p90
      %p92 = scmp.ne.s32.totalorder %s81, %s82
      %p93 = scmp.eq.s32.totalorder %s21, 0
      %p94 = por %p92, %p93
      %p95 = scmp.ne.s32.totalorder %s81, %s82
      %p96 = scmp.eq.s32.totalorder %s22, 1
      %p97 = por %p95, %p96
      %p99 = scmp.ne.s32.totalorder %s82, %s98
      %p100 = scmp.eq.s32.totalorder %s22, 0
      %p101 = por %p99, %p100
      %s102 = ssub.s32 %s16, %s23
      %p103 = scmp.eq.s32.totalorder %s102, 0
      %s105 = sadd.s32 %s104, 1
      %s106 = scalar_select %p103, %s104, %s105
      %p109 = pneg %p103
      %p110 = scmp.eq.s32.totalorder %s16, 1
      %p111 = por %p109, %p110
      %p112 = scmp.ne.s32.totalorder %s104, %s107
      %p113 = scmp.eq.s32.totalorder %s16, 0
      %p114 = por %p112, %p113
      %p115 = scmp.ne.s32.totalorder %s104, %s107
      %p116 = scmp.eq.s32.totalorder %s21, 1
      %p117 = por %p115, %p116
      %p118 = scmp.ne.s32.totalorder %s107, %s108
      %p119 = scmp.eq.s32.totalorder %s21, 0
      %p120 = por %p118, %p119
      %p121 = scmp.ne.s32.totalorder %s107, %s108
      %p122 = scmp.eq.s32.totalorder %s22, 1
      %p123 = por %p121, %p122
      %p125 = scmp.ne.s32.totalorder %s108, %s124
      %p126 = scmp.eq.s32.totalorder %s22, 0
      %p127 = por %p125, %p126
      %p128 = scmp.le.s32.totalorder 1, %s16
      %p129 = scmp.lt.s32.totalorder %s16, 3
      %p130 = pnand %p128, %p129
      %p131 = pneg %p130
      // Predicated region
      $region9: #{tpu_custom_call.1} parent=5 // pred_check
        _
      $region10: #{tpu_custom_call.1} parent=5 // pred_check_branch
        %133 = sbr.rel (%p130) target = $region12
      $region11: #{tpu_custom_call.1} parent=5 // pred_region
        %s134 = ssub.s32 %s16, 1
      $region12: #{tpu_custom_call.1} parent=5 // pred_fallthru
        _
      %p135 = scmp.lt.s32.totalorder %s16, 2
      // Predicated region
      $region13: #{tpu_custom_call.1} parent=5 // pred_check
        %p136 = pneg %p135
      $region14: #{tpu_custom_call.1} parent=5 // pred_check_branch
        %138 = sbr.rel (%p136) target = $region16
      $region15: #{tpu_custom_call.1} parent=5 // pred_region
        // Predicated region
        $region17: #{tpu_custom_call.1} parent=15 // pred_check
          %p139 = pneg %p36
        $region18: #{tpu_custom_call.1} parent=15 // pred_check_branch
          %141 = sbr.rel (%p139) target = $region20
        $region19: #{tpu_custom_call.1} parent=15 // pred_region
          %s142 = smul.u32 4, %s16
          %p143 = scmp.lt.s32.totalorder %s142, 7
          %s144 = scalar_select %p143, %s142, 7
          %s145 = smul.addr %s144, 8
          %s146 = scalar_lea.vmem %s0, %s145
          %s147 = smul.u32 4, %s16
        $region20: #{tpu_custom_call.1} parent=15 // pred_fallthru
          _
        // Predicated region
        $region21: #{tpu_custom_call.1} parent=15 // pred_check
          %p148 = pneg %p62
        $region22: #{tpu_custom_call.1} parent=15 // pred_check_branch
          %150 = sbr.rel (%p148) target = $region24
        $region23: #{tpu_custom_call.1} parent=15 // pred_region
          %s151 = smul.u32 4, %s16
          %p152 = scmp.lt.s32.totalorder %s151, 7
          %s153 = scalar_select %p152, %s151, 7
          %s154 = smul.addr %s153, 8
          %s155 = scalar_lea.vmem %s1, %s154
          %s156 = smul.u32 4, %s16
        $region24: #{tpu_custom_call.1} parent=15 // pred_fallthru
          _
      $region16: #{tpu_custom_call.1} parent=5 // pred_fallthru
        _
      %p157 = scmp.le.s32.totalorder 1, %s16
      %p158 = scmp.lt.s32.totalorder %s16, 3
      %p159 = pnand %p157, %p158
      %p160 = pneg %p159
      // Predicated region
      $region25: #{tpu_custom_call.1} parent=5 // pred_check
        _
      $region26: #{tpu_custom_call.1} parent=5 // pred_check_branch
        %162 = sbr.rel (%p159) target = $region28
      $region27: #{tpu_custom_call.1} parent=5 // pred_region
        %s163 = ssub.s32 %s16, 1
        %s164 = smul.u32 4, %s21
        %p165 = scmp.lt.s32.totalorder %s164, 7
        %s166 = scalar_select %p165, %s164, 7
        %s167 = smul.addr %s166, 8
        %s168 = scalar_lea.vmem %s0, %s167
        %p169 = pneg %p42
        %p170 = pneg %p39
        %s171 = smul.u32 4, %s21
        %p172 = scmp.lt.s32.totalorder %s171, 7
        %s173 = scalar_select %p172, %s171, 7
        %s174 = smul.addr %s173, 8
        %s175 = scalar_lea.vmem %s1, %s174
        %p176 = pneg %p68
        %p177 = pneg %p65
        %p178 = pneg %p94
        %p179 = pneg %p91
        %s180 = sand.u32 %s81, 1
        %s181 = scalar_lea.sflag [#allocation3], %s180
        %s182 = sand.u32 %s81, 1
        %s183 = smul.addr %s182, 32
        %s184 = scalar_lea.vmem [#allocation2], %s183
        %p185 = pneg %p120
        %p186 = pneg %p117
        %s187 = sand.u32 %s107, 1
        %s188 = scalar_lea.sflag [#allocation5], %s187
        %s189 = sand.u32 %s107, 1
        %s190 = smul.addr %s189, 8
        %s191 = scalar_lea.vmem [#allocation4], %s190
        %s192 = smul.u32 4, %s21
        %p193 = scmp.lt.s32.totalorder %s192, 7
        %s194 = scalar_select %p193, %s192, 7
        %s195 = smul.addr %s194, 8
        %s196 = scalar_lea.vmem %s0, %s195
        %s197 = smul.u32 4, %s21
        %s198 = smul.u32 4, %s21
        %p199 = scmp.lt.s32.totalorder %s198, 7
        %s200 = scalar_select %p199, %s198, 7
        %s201 = smul.addr %s200, 8
        %s202 = scalar_lea.vmem %s1, %s201
        %s203 = smul.u32 4, %s21
        %s204 = smul.u32 4, %s21
        %v207 = vld [vmem:[%s196] sm:$0xff]
        %v208 = vld [vmem:[%s196 + $0x8] sm:$0xff]
        %v209 = vld [vmem:[%s196 + $0x10] sm:$0xff]
        %v210 = vld [vmem:[%s196 + $0x18] sm:$0xff]
        %v211 = vld [vmem:[%s202] sm:$0xff]
        %v212 = vld [vmem:[%s202 + $0x8] sm:$0xff]
        %v213 = vld [vmem:[%s202 + $0x10] sm:$0xff]
        %v214 = vld [vmem:[%s202 + $0x18] sm:$0xff]
        %vm215 = vcmp.gt.s32.totalorder %v211, 0
        %v216 = vsel %vm215, %v211, 0
        %vm217 = vcmp.gt.s32.totalorder %v212, 0
        %v218 = vsel %vm217, %v212, 0
        %vm219 = vcmp.gt.s32.totalorder %v213, 0
        %v220 = vsel %vm219, %v213, 0
        %vm221 = vcmp.gt.s32.totalorder %v214, 0
        %v222 = vsel %vm221, %v214, 0
        %vm223 = vcmp.lt.s32.totalorder %v216, 126
        %v224 = vsel %vm223, %v216, 126
        %vm225 = vcmp.lt.s32.totalorder %v218, 126
        %v226 = vsel %vm225, %v218, 126
        %vm227 = vcmp.lt.s32.totalorder %v220, 126
        %v228 = vsel %vm227, %v220, 126
        %vm229 = vcmp.lt.s32.totalorder %v222, 126
        %v230 = vsel %vm229, %v222, 126
        %v231 = vadd.s32 %v224, 1
        %v232 = vadd.s32 %v226, 1
        %v233 = vadd.s32 %v228, 1
        %v234 = vadd.s32 %v230, 1
        %v235 = vlaneseq
        %v236 = vand.u32 %v235, 127
        %237 = vrot.lane.b32.xlu0 %v207, 1
        %v238 = vpop.permute.xlu0 %237
        %239 = vrot.lane.b32.xlu0 %v208, 1
        %v240 = vpop.permute.xlu0 %239
        %241 = vrot.lane.b32.xlu0 %v209, 1
        %v242 = vpop.permute.xlu0 %241
        %243 = vrot.lane.b32.xlu0 %v210, 1
        %v244 = vpop.permute.xlu0 %243
        %245 = vset.pattern.permute.xlu0 0
        %246 = vperm.xlu0 %245, %v231
        %v247 = vpop.permute.xlu0 %246
        %248 = vset.pattern.permute.xlu0 0
        %249 = vperm.xlu0 %248, %v232
        %v250 = vpop.permute.xlu0 %249
        %251 = vset.pattern.permute.xlu0 0
        %252 = vperm.xlu0 %251, %v233
        %v253 = vpop.permute.xlu0 %252
        %254 = vset.pattern.permute.xlu0 0
        %255 = vperm.xlu0 %254, %v234
        %v256 = vpop.permute.xlu0 %255
        %vm257 = vcmp.le.s32.totalorder %v236, %v247
        %vm258 = vcmp.le.s32.totalorder %v236, %v250
        %vm259 = vcmp.le.s32.totalorder %v236, %v253
        %vm260 = vcmp.le.s32.totalorder %v236, %v256
        %v261 = vsel %vm257, %v238, 0
        %v262 = vsel %vm258, %v240, 0
        %v263 = vsel %vm259, %v242, 0
        %v264 = vsel %vm260, %v244, 0
        %vm265 = vcmp.eq.s32.totalorder %v236, %v247
        %vm266 = vcmp.eq.s32.totalorder %v236, %v250
        %vm267 = vcmp.eq.s32.totalorder %v236, %v253
        %vm268 = vcmp.eq.s32.totalorder %v236, %v256
        %v269 = vsel %vm265, 102, %v261
        %v270 = vsel %vm266, 102, %v262
        %v271 = vsel %vm267, 102, %v263
        %v272 = vsel %vm268, 102, %v264
        %vm273 = vcmp.eq.s32.totalorder %v236, 0
        %v274 = vsel %vm273, 101, %v269
        %v275 = vsel %vm273, 101, %v270
        %v276 = vsel %vm273, 101, %v271
        %v277 = vsel %vm273, 101, %v272
        %278 = vst [vmem:[%s184] sm:$0xff] %v274
        %279 = vst [vmem:[%s184 + $0x8] sm:$0xff] %v275
        %280 = vst [vmem:[%s184 + $0x10] sm:$0xff] %v276
        %281 = vst [vmem:[%s184 + $0x18] sm:$0xff] %v277
        %vm282 = vmpackc.low %vm258, %vm257
        %vm283 = vmpackc.low %vm260, %vm259
        %vm284 = vmpackc.even %vm283, %vm282
        %v285 = vsel %vm284, 16843009, 0
        %286 = vst [vmem:[%s191] sm:$0xff] %v285
        %s287 = sand.u32 %s81, 1
        %s288 = scalar_lea.sflag [#allocation3], %s287
        %s289 = sand.u32 %s81, 1
        %s290 = smul.addr %s289, 32
        %s291 = scalar_lea.vmem [#allocation2], %s290
        %s292 = sand.u32 %s107, 1
        %s293 = scalar_lea.sflag [#allocation5], %s292
        %s294 = sand.u32 %s107, 1
        %s295 = smul.addr %s294, 8
        %s296 = scalar_lea.vmem [#allocation4], %s295
        // Predicated region
        $region29: #{tpu_custom_call.1} parent=27 // pred_check
          %p297 = pneg %p91
        $region30: #{tpu_custom_call.1} parent=27 // pred_check_branch
          %299 = sbr.rel (%p297) target = $region32
        $region31: #{tpu_custom_call.1} parent=27 // pred_region
          %s300 = smul.u32 4, %s21
          %s302 = ssub.s32 512, 512
          %303 = vsyncadd %s288, %s302
          %s304 = smul.addr %s300, 128
          %s305 = scalar_lea.hbm %s2, %s304
          %s306 = sshll.u32 %s291, 4
          %s307 = int_to_ptr.vmem [resolvable:$true] %s306
          %312 = dma.vmem_to_hbm [thread:$0]  %s307, 512, %s305, %s288, 128, 128, 8
        $region32: #{tpu_custom_call.1} parent=27 // pred_fallthru
          _
        // Predicated region
        $region33: #{tpu_custom_call.1} parent=27 // pred_check
          %p313 = pneg %p117
        $region34: #{tpu_custom_call.1} parent=27 // pred_check_branch
          %315 = sbr.rel (%p313) target = $region36
        $region35: #{tpu_custom_call.1} parent=27 // pred_region
          %s317 = ssub.s32 128, 128
          %318 = vsyncadd %s293, %s317
          %s319 = smul.addr %s21, 128
          %s320 = scalar_lea.hbm %s3, %s319
          %s322 = sshll.u32 %s296, 4
          %s323 = int_to_ptr.vmem [resolvable:$true] %s322
          %325 = dma.vmem_to_hbm [thread:$0]  %s323, 128, %s320, %s293
        $region36: #{tpu_custom_call.1} parent=27 // pred_fallthru
          _
      $region28: #{tpu_custom_call.1} parent=5 // pred_fallthru
        _
      %p326 = scmp.le.s32.totalorder 2, %s16
      // Predicated region
      $region37: #{tpu_custom_call.1} parent=5 // pred_check
        %p327 = pneg %p326
      $region38: #{tpu_custom_call.1} parent=5 // pred_check_branch
        %329 = sbr.rel (%p327) target = $region40
      $region39: #{tpu_custom_call.1} parent=5 // pred_region
        %s330 = ssub.s32 %s16, 2
        // Predicated region
        $region41: #{tpu_custom_call.1} parent=39 // pred_check
          %p331 = pneg %p97
        $region42: #{tpu_custom_call.1} parent=39 // pred_check_branch
          %333 = sbr.rel (%p331) target = $region44
        $region43: #{tpu_custom_call.1} parent=39 // pred_region
          %s334 = sand.u32 %s82, 1
          %s335 = scalar_lea.sflag [#allocation3], %s334
          %s336 = sand.u32 %s82, 1
          %s337 = smul.addr %s336, 32
          %s338 = scalar_lea.vmem [#allocation2], %s337
          %339 = dma.done %s335, 512
        $region44: #{tpu_custom_call.1} parent=39 // pred_fallthru
          _
        // Predicated region
        $region45: #{tpu_custom_call.1} parent=39 // pred_check
          %p340 = pneg %p123
        $region46: #{tpu_custom_call.1} parent=39 // pred_check_branch
          %342 = sbr.rel (%p340) target = $region48
        $region47: #{tpu_custom_call.1} parent=39 // pred_region
          %s343 = sand.u32 %s108, 1
          %s344 = scalar_lea.sflag [#allocation5], %s343
          %s345 = sand.u32 %s108, 1
          %s346 = smul.addr %s345, 8
          %s347 = scalar_lea.vmem [#allocation4], %s346
          %348 = dma.done %s344, 128
        $region48: #{tpu_custom_call.1} parent=39 // pred_fallthru
          _
      $region40: #{tpu_custom_call.1} parent=5 // pred_fallthru
        _
    $region6: #{tpu_custom_call.1} parent=1 // loop_footer
      %s20 = sadd.s32 1, %s16
    $region7: #{tpu_custom_call.1} parent=1 // loop_footer_branch
      %15 = sbr.rel target = $region3
    $region8: #{tpu_custom_call.1} parent=1 // loop_exit
      _
    %349 = vsyncpa [#allocation3], 1
    %s350 = scalar_lea.sflag [#allocation3], 1
    %351 = vsyncpa %s350, 1
    %352 = vsyncpa [#allocation5], 1
    %s353 = scalar_lea.sflag [#allocation5], 1
    %354 = vsyncpa %s353, 1

</llo_original>
